<compile_context>
chip_gen: v5e
topology: v5e:2x2
jax: 0.10.0
libtpu: 0.0.40
codegen_flags: <defaults>
</compile_context>

<pallas_src>
import functools

import jax
import jax.numpy as jnp
from jax.experimental import pallas as pl
from jax.experimental.pallas import tpu as pltpu


def _leaky_relu(z):
    return jnp.where(z >= 0, z, 0.01 * z)


def bnn_kernel(x_ref,
               w1m_ref, w1v_ref,
               w2m_ref, w2v_ref, b2m_ref, b2v_ref,
               w3m_ref, w3v_ref, b3m_ref, b3v_ref,
               w4m_ref, w4v_ref, b4m_ref, b4v_ref,
               eps_ref, out_ref):
    h = w1m_ref.shape[1]
    c = out_ref.shape[-1]

    x = x_ref[...]          # (TM, in)  float32
    eps = eps_ref[...]      # (TM, 3h+c) float32

    def layer(hin, wm_ref, wv_ref, bm_ref, bv_ref, e, nonlin):
        mm_dtype = wm_ref.dtype
        # Two separate MXU dots (mean path / variance path); f32 accumulation.
        zm = jnp.dot(hin.astype(mm_dtype), wm_ref[...],
                     preferred_element_type=jnp.float32)
        zv = jnp.dot((hin * hin).astype(mm_dtype), wv_ref[...],
                     preferred_element_type=jnp.float32)
        if bm_ref is not None:          # appended-ones hidden-bias row
            zm = zm + bm_ref[...]
            zv = zv + bv_ref[...]
        return nonlin(zm + jnp.sqrt(zv) * e)

    h1 = layer(x, w1m_ref, w1v_ref, None, None,
               eps[:, 0:h], _leaky_relu)
    h2 = layer(h1, w2m_ref, w2v_ref, b2m_ref, b2v_ref,
               eps[:, h:2 * h], _leaky_relu)
    h3 = layer(h2, w3m_ref, w3v_ref, b3m_ref, b3v_ref,
               eps[:, 2 * h:3 * h], _leaky_relu)
    out_ref[...] = layer(h3, w4m_ref, w4v_ref, b4m_ref, b4v_ref,
                         eps[:, 3 * h:3 * h + c], jax.nn.sigmoid)


def _split_layer(a_mean, a_scale_eff, has_bias_row, matmul_dtype):
    """Split the appended-ones bias row and pre-square the effective scale.
    Weights go to the matmul dtype; bias rows stay f32 (added to f32 acc)."""
    s2 = (a_scale_eff * a_scale_eff).astype(jnp.float32)
    if has_bias_row:
        wm, bm = a_mean[:-1, :], a_mean[-1:, :]
        wv, bv = s2[:-1, :], s2[-1:, :]
        return (wm.astype(matmul_dtype), wv.astype(matmul_dtype),
                bm.astype(jnp.float32), bv.astype(jnp.float32))
    return a_mean.astype(matmul_dtype), s2.astype(matmul_dtype), None, None


@functools.partial(jax.jit, static_argnames=("block_m", "matmul_dtype"))
def bnn_forward(x, params, eps, *, block_m=512, matmul_dtype=jnp.float32):
    """x: (N, inputsize); eps: dict of (n_samples, N, dim) guide noise.
    Returns (n_samples, N, n_classes) stacked guide-trace 'logits' values."""
    n, fin = x.shape
    h = params["a1_mean"].shape[1]
    c = params["a4_mean"].shape[1]
    s = eps["e1"].shape[0]
    sn = s * n

    # ---- weight prep (once, outside the kernel) ----
    w1m, w1v, _, _ = _split_layer(
        params["a1_mean"], params["a1_dropout"] * params["a1_scale"],
        False, matmul_dtype)
    w2m, w2v, b2m, b2v = _split_layer(
        params["a2_mean"], params["a2_dropout"] * params["a2_scale"],
        True, matmul_dtype)
    w3m, w3v, b3m, b3v = _split_layer(
        params["a3_mean"], params["a3_dropout"] * params["a3_scale"],
        True, matmul_dtype)
    w4m, w4v, b4m, b4v = _split_layer(
        params["a4_mean"], params["a4_scale"], True, matmul_dtype)

    # ---- fold the sample axis into batch rows (M = s*n), pack eps into one
    #      slab, and tile x across samples here (layer-1 tiling hoisted) ----
    eps_packed = jnp.concatenate(
        [eps["e1"].reshape(sn, h), eps["e2"].reshape(sn, h),
         eps["e3"].reshape(sn, h), eps["e4"].reshape(sn, c)], axis=-1)
    x_t = jnp.broadcast_to(x[None], (s, n, fin)).reshape(sn, fin)
    x_t = x_t.astype(jnp.float32)
    # TODO(synk): eps could be drawn in-kernel via pltpu.prng_seed +
    # pltpu.stateful_normal to remove the dominant HBM input stream at large M;
    # kept explicit here so the Pyro guide-trace noise is exactly checkable.

    # ---- 1-D "parallel" row-block grid over M ----
    if sn <= block_m:
        tm, sn_pad = sn, sn
    else:
        assert block_m % 8 == 0
        tm = block_m
        sn_pad = pl.cdiv(sn, tm) * tm
    if sn_pad != sn:
        pad = sn_pad - sn
        x_t = jnp.pad(x_t, ((0, pad), (0, 0)))
        eps_packed = jnp.pad(eps_packed, ((0, pad), (0, 0)))
    grid = (sn_pad // tm,)

    full = lambda a: pl.BlockSpec(a.shape, lambda i: (0, 0))
    rows = lambda width: pl.BlockSpec((tm, width), lambda i: (i, 0))

    out = pl.pallas_call(
        bnn_kernel,
        out_shape=jax.ShapeDtypeStruct((sn_pad, c), jnp.float32),
        grid=grid,
        in_specs=[rows(fin),
                  full(w1m), full(w1v),
                  full(w2m), full(w2v), full(b2m), full(b2v),
                  full(w3m), full(w3v), full(b3m), full(b3v),
                  full(w4m), full(w4v), full(b4m), full(b4v),
                  rows(3 * h + c)],
        out_specs=rows(c),
        compiler_params=pltpu.CompilerParams(
            dimension_semantics=("parallel",)),
    )(x_t, w1m, w1v, w2m, w2v, b2m, b2v, w3m, w3v, b3m, b3v,
      w4m, w4v, b4m, b4v, eps_packed)

    return out[:sn].reshape(s, n, c)


def _reference_forward(x, params, eps):
    """Pure-JAX reference mirroring the Pyro HiddenLayer math exactly
    (ones column appended to each hidden output)."""
    n = x.shape[0]
    ones = jnp.ones((n, 1), x.dtype)

    def layer(hin, a_mean, a_scale_eff, e, nonlin):
        zm = hin @ a_mean
        zv = (hin * hin) @ (a_scale_eff ** 2)
        return nonlin(zm + jnp.sqrt(zv) * e)

    s1 = params["a1_dropout"] * params["a1_scale"]
    s2 = params["a2_dropout"] * params["a2_scale"]
    s3 = params["a3_dropout"] * params["a3_scale"]
    s4 = params["a4_scale"]

    def one_sample(e1, e2, e3, e4):
        h1 = layer(x, params["a1_mean"], s1, e1, _leaky_relu)
        h2 = layer(jnp.concatenate([h1, ones], -1), params["a2_mean"], s2, e2,
                   _leaky_relu)
        h3 = layer(jnp.concatenate([h2, ones], -1), params["a3_mean"], s3, e3,
                   _leaky_relu)
        return layer(jnp.concatenate([h3, ones], -1), params["a4_mean"], s4, e4,
                     jax.nn.sigmoid)

    return jax.vmap(one_sample)(eps["e1"], eps["e2"], eps["e3"], eps["e4"])


def make_params(key, inputsize, n_hidden, n_classes):
    """Deterministic guide-parameter init mirroring BNN.guide:
       a*_mean = 0.01*randn, a*_scale = 0.1*ones, dropouts (0.25, 1.0, 1.0)."""
    k1, k2, k3, k4 = jax.random.split(key, 4)
    return dict(
        a1_mean=0.01 * jax.random.normal(k1, (inputsize, n_hidden), jnp.float32),
        a1_scale=0.1 * jnp.ones((inputsize, n_hidden), jnp.float32),
        a1_dropout=jnp.float32(0.25),
        a2_mean=0.01 * jax.random.normal(k2, (n_hidden + 1, n_hidden), jnp.float32),
        a2_scale=0.1 * jnp.ones((n_hidden + 1, n_hidden), jnp.float32),
        a2_dropout=jnp.float32(1.0),
        a3_mean=0.01 * jax.random.normal(k3, (n_hidden + 1, n_hidden), jnp.float32),
        a3_scale=0.1 * jnp.ones((n_hidden + 1, n_hidden), jnp.float32),
        a3_dropout=jnp.float32(1.0),
        a4_mean=0.01 * jax.random.normal(k4, (n_hidden + 1, n_classes), jnp.float32),
        a4_scale=0.1 * jnp.ones((n_hidden + 1, n_classes), jnp.float32),
    )


if __name__ == "__main__":
    inputsize, n_hidden, n_classes = 32, 32, 8
    batch, n_samples = 8, 4

    key = jax.random.PRNGKey(0)
    kx, kp, ke1, ke2, ke3, ke4 = jax.random.split(key, 6)

    x = jax.random.normal(kx, (batch, inputsize), jnp.float32)
    params = make_params(kp, inputsize, n_hidden, n_classes)
    eps = dict(
        e1=jax.random.normal(ke1, (n_samples, batch, n_hidden), jnp.float32),
        e2=jax.random.normal(ke2, (n_samples, batch, n_hidden), jnp.float32),
        e3=jax.random.normal(ke3, (n_samples, batch, n_hidden), jnp.float32),
        e4=jax.random.normal(ke4, (n_samples, batch, n_classes), jnp.float32),
    )

    ref = jax.block_until_ready(_reference_forward(x, params, eps))

    # f32, single grid step (whole M resident)
    out = jax.block_until_ready(bnn_forward(x, params, eps))
    assert out.shape == (n_samples, batch, n_classes)
    assert jnp.allclose(out, ref, atol=1e-5, rtol=1e-4), float(
        jnp.max(jnp.abs(out - ref)))

    # f32, exercise the row-block grid path (grid > 1, "parallel" axis)
    out_g = jax.block_until_ready(bnn_forward(x, params, eps, block_m=16))
    assert jnp.allclose(out_g, ref, atol=1e-5, rtol=1e-4), float(
        jnp.max(jnp.abs(out_g - ref)))

    # bf16 matmul-operand path (f32 accumulation + f32 elementwise)
    out_bf = jax.block_until_ready(
        bnn_forward(x, params, eps, matmul_dtype=jnp.bfloat16))
    assert jnp.allclose(out_bf, ref, atol=2e-2), float(
        jnp.max(jnp.abs(out_bf - ref)))

    print("KERNEL_OK")
</pallas_src>

<mosaic_0001>
module attributes {stable_mosaic.version = 11 : i64} {
  func.func @bnn_kernel(%arg0: i32, %arg1: memref<32x32xf32, #tpu.memory_space<vmem>>, %arg2: memref<32x32xf32, #tpu.memory_space<vmem>>, %arg3: memref<32x32xf32, #tpu.memory_space<vmem>>, %arg4: memref<32x32xf32, #tpu.memory_space<vmem>>, %arg5: memref<32x32xf32, #tpu.memory_space<vmem>>, %arg6: memref<1x32xf32, #tpu.memory_space<vmem>>, %arg7: memref<1x32xf32, #tpu.memory_space<vmem>>, %arg8: memref<32x32xf32, #tpu.memory_space<vmem>>, %arg9: memref<32x32xf32, #tpu.memory_space<vmem>>, %arg10: memref<1x32xf32, #tpu.memory_space<vmem>>, %arg11: memref<1x32xf32, #tpu.memory_space<vmem>>, %arg12: memref<32x8xf32, #tpu.memory_space<vmem>>, %arg13: memref<32x8xf32, #tpu.memory_space<vmem>>, %arg14: memref<1x8xf32, #tpu.memory_space<vmem>>, %arg15: memref<1x8xf32, #tpu.memory_space<vmem>>, %arg16: memref<32x104xf32, #tpu.memory_space<vmem>>, %arg17: memref<32x8xf32, #tpu.memory_space<vmem>>) attributes {dimension_semantics = [#tpu.dimension_semantics<parallel>], iteration_bounds = array<i64: 1>, scalar_prefetch = 0 : i64, scratch_operands = 0 : i64, tpu.core_type = #tpu.core_type<tc>, window_params = [{transform_indices = @transform_0, window_bounds = array<i64: 32, 32>}, {pipeline_mode = #tpu.pipeline_mode<synchronous>, transform_indices = @transform_1, window_bounds = array<i64: 32, 32>}, {pipeline_mode = #tpu.pipeline_mode<synchronous>, transform_indices = @transform_2, window_bounds = array<i64: 32, 32>}, {pipeline_mode = #tpu.pipeline_mode<synchronous>, transform_indices = @transform_3, window_bounds = array<i64: 32, 32>}, {pipeline_mode = #tpu.pipeline_mode<synchronous>, transform_indices = @transform_4, window_bounds = array<i64: 32, 32>}, {pipeline_mode = #tpu.pipeline_mode<synchronous>, transform_indices = @transform_5, window_bounds = array<i64: 1, 32>}, {pipeline_mode = #tpu.pipeline_mode<synchronous>, transform_indices = @transform_6, window_bounds = array<i64: 1, 32>}, {pipeline_mode = #tpu.pipeline_mode<synchronous>, transform_indices = @transform_7, window_bounds = array<i64: 32, 32>}, {pipeline_mode = #tpu.pipeline_mode<synchronous>, transform_indices = @transform_8, window_bounds = array<i64: 32, 32>}, {pipeline_mode = #tpu.pipeline_mode<synchronous>, transform_indices = @transform_9, window_bounds = array<i64: 1, 32>}, {pipeline_mode = #tpu.pipeline_mode<synchronous>, transform_indices = @transform_10, window_bounds = array<i64: 1, 32>}, {pipeline_mode = #tpu.pipeline_mode<synchronous>, transform_indices = @transform_11, window_bounds = array<i64: 32, 8>}, {pipeline_mode = #tpu.pipeline_mode<synchronous>, transform_indices = @transform_12, window_bounds = array<i64: 32, 8>}, {pipeline_mode = #tpu.pipeline_mode<synchronous>, transform_indices = @transform_13, window_bounds = array<i64: 1, 8>}, {pipeline_mode = #tpu.pipeline_mode<synchronous>, transform_indices = @transform_14, window_bounds = array<i64: 1, 8>}, {transform_indices = @transform_15, window_bounds = array<i64: 32, 104>}, {transform_indices = @transform_16, window_bounds = array<i64: 32, 8>}]} {
    %c0 = arith.constant 0 : index
    %c0_0 = arith.constant 0 : index
    %0 = vector.load %arg1[%c0, %c0_0] : memref<32x32xf32, #tpu.memory_space<vmem>>, vector<32x32xf32>
    %c0_1 = arith.constant 0 : index
    %c0_2 = arith.constant 0 : index
    %1 = vector.load %arg16[%c0_1, %c0_2] : memref<32x104xf32, #tpu.memory_space<vmem>>, vector<32x104xf32>
    %2 = vector.extract_strided_slice %1 {offsets = [0, 0], sizes = [32, 32], strides = [1, 1]} : vector<32x104xf32> to vector<32x32xf32>
    %c0_3 = arith.constant 0 : index
    %c0_4 = arith.constant 0 : index
    %3 = vector.load %arg2[%c0_3, %c0_4] : memref<32x32xf32, #tpu.memory_space<vmem>>, vector<32x32xf32>
    %cst = arith.constant dense<0.000000e+00> : vector<32x32xf32>
    %4 = tpu.matmul %0, %3, %cst {dimension_numbers = #tpu.dot_dimension_numbers<[1], [0], [0], [1], [0, 0, 1, 1], [], []>} : vector<32x32xf32>, vector<32x32xf32>, vector<32x32xf32> -> vector<32x32xf32>
    %5 = arith.mulf %0, %0 : vector<32x32xf32>
    %c0_5 = arith.constant 0 : index
    %c0_6 = arith.constant 0 : index
    %6 = vector.load %arg3[%c0_5, %c0_6] : memref<32x32xf32, #tpu.memory_space<vmem>>, vector<32x32xf32>
    %cst_7 = arith.constant dense<0.000000e+00> : vector<32x32xf32>
    %7 = tpu.matmul %5, %6, %cst_7 {dimension_numbers = #tpu.dot_dimension_numbers<[1], [0], [0], [1], [0, 0, 1, 1], [], []>} : vector<32x32xf32>, vector<32x32xf32>, vector<32x32xf32> -> vector<32x32xf32>
    %8 = math.sqrt %7 : vector<32x32xf32>
    %9 = arith.mulf %8, %2 : vector<32x32xf32>
    %10 = arith.addf %4, %9 : vector<32x32xf32>
    %cst_8 = arith.constant 0.000000e+00 : f32
    %11 = vector.broadcast %cst_8 : f32 to vector<32x32xf32>
    %12 = arith.cmpf oge, %10, %11 : vector<32x32xf32>
    %cst_9 = arith.constant 0.00999999977 : f32
    %13 = vector.broadcast %cst_9 : f32 to vector<32x32xf32>
    %14 = arith.mulf %13, %10 : vector<32x32xf32>
    %15 = arith.select %12, %10, %14 : vector<32x32xi1>, vector<32x32xf32>
    %16 = vector.extract_strided_slice %1 {offsets = [0, 32], sizes = [32, 32], strides = [1, 1]} : vector<32x104xf32> to vector<32x32xf32>
    %c0_10 = arith.constant 0 : index
    %c0_11 = arith.constant 0 : index
    %17 = vector.load %arg4[%c0_10, %c0_11] : memref<32x32xf32, #tpu.memory_space<vmem>>, vector<32x32xf32>
    %cst_12 = arith.constant dense<0.000000e+00> : vector<32x32xf32>
    %18 = tpu.matmul %15, %17, %cst_12 {dimension_numbers = #tpu.dot_dimension_numbers<[1], [0], [0], [1], [0, 0, 1, 1], [], []>} : vector<32x32xf32>, vector<32x32xf32>, vector<32x32xf32> -> vector<32x32xf32>
    %19 = arith.mulf %15, %15 : vector<32x32xf32>
    %c0_13 = arith.constant 0 : index
    %c0_14 = arith.constant 0 : index
    %20 = vector.load %arg5[%c0_13, %c0_14] : memref<32x32xf32, #tpu.memory_space<vmem>>, vector<32x32xf32>
    %cst_15 = arith.constant dense<0.000000e+00> : vector<32x32xf32>
    %21 = tpu.matmul %19, %20, %cst_15 {dimension_numbers = #tpu.dot_dimension_numbers<[1], [0], [0], [1], [0, 0, 1, 1], [], []>} : vector<32x32xf32>, vector<32x32xf32>, vector<32x32xf32> -> vector<32x32xf32>
    %c0_16 = arith.constant 0 : index
    %c0_17 = arith.constant 0 : index
    %22 = vector.load %arg6[%c0_16, %c0_17] : memref<1x32xf32, #tpu.memory_space<vmem>>, vector<1x32xf32>
    %23 = vector.broadcast %22 : vector<1x32xf32> to vector<32x32xf32>
    %24 = arith.addf %18, %23 : vector<32x32xf32>
    %c0_18 = arith.constant 0 : index
    %c0_19 = arith.constant 0 : index
    %25 = vector.load %arg7[%c0_18, %c0_19] : memref<1x32xf32, #tpu.memory_space<vmem>>, vector<1x32xf32>
    %26 = vector.broadcast %25 : vector<1x32xf32> to vector<32x32xf32>
    %27 = arith.addf %21, %26 : vector<32x32xf32>
    %28 = math.sqrt %27 : vector<32x32xf32>
    %29 = arith.mulf %28, %16 : vector<32x32xf32>
    %30 = arith.addf %24, %29 : vector<32x32xf32>
    %cst_20 = arith.constant 0.000000e+00 : f32
    %31 = vector.broadcast %cst_20 : f32 to vector<32x32xf32>
    %32 = arith.cmpf oge, %30, %31 : vector<32x32xf32>
    %cst_21 = arith.constant 0.00999999977 : f32
    %33 = vector.broadcast %cst_21 : f32 to vector<32x32xf32>
    %34 = arith.mulf %33, %30 : vector<32x32xf32>
    %35 = arith.select %32, %30, %34 : vector<32x32xi1>, vector<32x32xf32>
    %36 = vector.extract_strided_slice %1 {offsets = [0, 64], sizes = [32, 32], strides = [1, 1]} : vector<32x104xf32> to vector<32x32xf32>
    %c0_22 = arith.constant 0 : index
    %c0_23 = arith.constant 0 : index
    %37 = vector.load %arg8[%c0_22, %c0_23] : memref<32x32xf32, #tpu.memory_space<vmem>>, vector<32x32xf32>
    %cst_24 = arith.constant dense<0.000000e+00> : vector<32x32xf32>
    %38 = tpu.matmul %35, %37, %cst_24 {dimension_numbers = #tpu.dot_dimension_numbers<[1], [0], [0], [1], [0, 0, 1, 1], [], []>} : vector<32x32xf32>, vector<32x32xf32>, vector<32x32xf32> -> vector<32x32xf32>
    %39 = arith.mulf %35, %35 : vector<32x32xf32>
    %c0_25 = arith.constant 0 : index
    %c0_26 = arith.constant 0 : index
    %40 = vector.load %arg9[%c0_25, %c0_26] : memref<32x32xf32, #tpu.memory_space<vmem>>, vector<32x32xf32>
    %cst_27 = arith.constant dense<0.000000e+00> : vector<32x32xf32>
    %41 = tpu.matmul %39, %40, %cst_27 {dimension_numbers = #tpu.dot_dimension_numbers<[1], [0], [0], [1], [0, 0, 1, 1], [], []>} : vector<32x32xf32>, vector<32x32xf32>, vector<32x32xf32> -> vector<32x32xf32>
    %c0_28 = arith.constant 0 : index
    %c0_29 = arith.constant 0 : index
    %42 = vector.load %arg10[%c0_28, %c0_29] : memref<1x32xf32, #tpu.memory_space<vmem>>, vector<1x32xf32>
    %43 = vector.broadcast %42 : vector<1x32xf32> to vector<32x32xf32>
    %44 = arith.addf %38, %43 : vector<32x32xf32>
    %c0_30 = arith.constant 0 : index
    %c0_31 = arith.constant 0 : index
    %45 = vector.load %arg11[%c0_30, %c0_31] : memref<1x32xf32, #tpu.memory_space<vmem>>, vector<1x32xf32>
    %46 = vector.broadcast %45 : vector<1x32xf32> to vector<32x32xf32>
    %47 = arith.addf %41, %46 : vector<32x32xf32>
    %48 = math.sqrt %47 : vector<32x32xf32>
    %49 = arith.mulf %48, %36 : vector<32x32xf32>
    %50 = arith.addf %44, %49 : vector<32x32xf32>
    %cst_32 = arith.constant 0.000000e+00 : f32
    %51 = vector.broadcast %cst_32 : f32 to vector<32x32xf32>
    %52 = arith.cmpf oge, %50, %51 : vector<32x32xf32>
    %cst_33 = arith.constant 0.00999999977 : f32
    %53 = vector.broadcast %cst_33 : f32 to vector<32x32xf32>
    %54 = arith.mulf %53, %50 : vector<32x32xf32>
    %55 = arith.select %52, %50, %54 : vector<32x32xi1>, vector<32x32xf32>
    %56 = vector.extract_strided_slice %1 {offsets = [0, 96], sizes = [32, 8], strides = [1, 1]} : vector<32x104xf32> to vector<32x8xf32>
    %c0_34 = arith.constant 0 : index
    %c0_35 = arith.constant 0 : index
    %57 = vector.load %arg12[%c0_34, %c0_35] : memref<32x8xf32, #tpu.memory_space<vmem>>, vector<32x8xf32>
    %cst_36 = arith.constant dense<0.000000e+00> : vector<32x8xf32>
    %58 = tpu.matmul %55, %57, %cst_36 {dimension_numbers = #tpu.dot_dimension_numbers<[1], [0], [0], [1], [0, 0, 1, 1], [], []>} : vector<32x32xf32>, vector<32x8xf32>, vector<32x8xf32> -> vector<32x8xf32>
    %59 = arith.mulf %55, %55 : vector<32x32xf32>
    %c0_37 = arith.constant 0 : index
    %c0_38 = arith.constant 0 : index
    %60 = vector.load %arg13[%c0_37, %c0_38] : memref<32x8xf32, #tpu.memory_space<vmem>>, vector<32x8xf32>
    %cst_39 = arith.constant dense<0.000000e+00> : vector<32x8xf32>
    %61 = tpu.matmul %59, %60, %cst_39 {dimension_numbers = #tpu.dot_dimension_numbers<[1], [0], [0], [1], [0, 0, 1, 1], [], []>} : vector<32x32xf32>, vector<32x8xf32>, vector<32x8xf32> -> vector<32x8xf32>
    %c0_40 = arith.constant 0 : index
    %c0_41 = arith.constant 0 : index
    %62 = vector.load %arg14[%c0_40, %c0_41] : memref<1x8xf32, #tpu.memory_space<vmem>>, vector<1x8xf32>
    %63 = vector.broadcast %62 : vector<1x8xf32> to vector<32x8xf32>
    %64 = arith.addf %58, %63 : vector<32x8xf32>
    %c0_42 = arith.constant 0 : index
    %c0_43 = arith.constant 0 : index
    %65 = vector.load %arg15[%c0_42, %c0_43] : memref<1x8xf32, #tpu.memory_space<vmem>>, vector<1x8xf32>
    %66 = vector.broadcast %65 : vector<1x8xf32> to vector<32x8xf32>
    %67 = arith.addf %61, %66 : vector<32x8xf32>
    %68 = math.sqrt %67 : vector<32x8xf32>
    %69 = arith.mulf %68, %56 : vector<32x8xf32>
    %70 = arith.addf %64, %69 : vector<32x8xf32>
    %71 = arith.negf %70 : vector<32x8xf32>
    %72 = math.exp %71 : vector<32x8xf32>
    %cst_44 = arith.constant 1.000000e+00 : f32
    %73 = vector.broadcast %cst_44 : f32 to vector<32x8xf32>
    %74 = arith.addf %73, %72 : vector<32x8xf32>
    %75 = arith.divf %73, %74 : vector<32x8xf32>
    %c0_45 = arith.constant 0 : index
    %c0_46 = arith.constant 0 : index
    %76 = vector.load %arg17[%c0_45, %c0_46] : memref<32x8xf32, #tpu.memory_space<vmem>>, vector<32x8xf32>
    tpu.vector_store %arg17[%c0_45, %c0_46], %75 {strides = array<i32>} : memref<32x8xf32, #tpu.memory_space<vmem>>, vector<32x8xf32>,
    return
  }
  func.func @transform_0(%arg0: i32) -> (i32, i32) {
    %c0_i32 = arith.constant 0 : i32
    %c0_i32_0 = arith.constant 0 : i32
    return %arg0, %c0_i32 : i32, i32
  }
  func.func @transform_1(%arg0: i32) -> (i32, i32) {
    %c0_i32 = arith.constant 0 : i32
    %c0_i32_0 = arith.constant 0 : i32
    %c0_i32_1 = arith.constant 0 : i32
    return %c0_i32, %c0_i32_0 : i32, i32
  }
  func.func @transform_2(%arg0: i32) -> (i32, i32) {
    %c0_i32 = arith.constant 0 : i32
    %c0_i32_0 = arith.constant 0 : i32
    %c0_i32_1 = arith.constant 0 : i32
    return %c0_i32, %c0_i32_0 : i32, i32
  }
  func.func @transform_3(%arg0: i32) -> (i32, i32) {
    %c0_i32 = arith.constant 0 : i32
    %c0_i32_0 = arith.constant 0 : i32
    %c0_i32_1 = arith.constant 0 : i32
    return %c0_i32, %c0_i32_0 : i32, i32
  }
  func.func @transform_4(%arg0: i32) -> (i32, i32) {
    %c0_i32 = arith.constant 0 : i32
    %c0_i32_0 = arith.constant 0 : i32
    %c0_i32_1 = arith.constant 0 : i32
    return %c0_i32, %c0_i32_0 : i32, i32
  }
  func.func @transform_5(%arg0: i32) -> (i32, i32) {
    %c0_i32 = arith.constant 0 : i32
    %c0_i32_0 = arith.constant 0 : i32
    %c0_i32_1 = arith.constant 0 : i32
    return %c0_i32, %c0_i32_0 : i32, i32
  }
  func.func @transform_6(%arg0: i32) -> (i32, i32) {
    %c0_i32 = arith.constant 0 : i32
    %c0_i32_0 = arith.constant 0 : i32
    %c0_i32_1 = arith.constant 0 : i32
    return %c0_i32, %c0_i32_0 : i32, i32
  }
  func.func @transform_7(%arg0: i32) -> (i32, i32) {
    %c0_i32 = arith.constant 0 : i32
    %c0_i32_0 = arith.constant 0 : i32
    %c0_i32_1 = arith.constant 0 : i32
    return %c0_i32, %c0_i32_0 : i32, i32
  }
  func.func @transform_8(%arg0: i32) -> (i32, i32) {
    %c0_i32 = arith.constant 0 : i32
    %c0_i32_0 = arith.constant 0 : i32
    %c0_i32_1 = arith.constant 0 : i32
    return %c0_i32, %c0_i32_0 : i32, i32
  }
  func.func @transform_9(%arg0: i32) -> (i32, i32) {
    %c0_i32 = arith.constant 0 : i32
    %c0_i32_0 = arith.constant 0 : i32
    %c0_i32_1 = arith.constant 0 : i32
    return %c0_i32, %c0_i32_0 : i32, i32
  }
  func.func @transform_10(%arg0: i32) -> (i32, i32) {
    %c0_i32 = arith.constant 0 : i32
    %c0_i32_0 = arith.constant 0 : i32
    %c0_i32_1 = arith.constant 0 : i32
    return %c0_i32, %c0_i32_0 : i32, i32
  }
  func.func @transform_11(%arg0: i32) -> (i32, i32) {
    %c0_i32 = arith.constant 0 : i32
    %c0_i32_0 = arith.constant 0 : i32
    %c0_i32_1 = arith.constant 0 : i32
    return %c0_i32, %c0_i32_0 : i32, i32
  }
  func.func @transform_12(%arg0: i32) -> (i32, i32) {
    %c0_i32 = arith.constant 0 : i32
    %c0_i32_0 = arith.constant 0 : i32
    %c0_i32_1 = arith.constant 0 : i32
    return %c0_i32, %c0_i32_0 : i32, i32
  }
  func.func @transform_13(%arg0: i32) -> (i32, i32) {
    %c0_i32 = arith.constant 0 : i32
    %c0_i32_0 = arith.constant 0 : i32
    %c0_i32_1 = arith.constant 0 : i32
    return %c0_i32, %c0_i32_0 : i32, i32
  }
  func.func @transform_14(%arg0: i32) -> (i32, i32) {
    %c0_i32 = arith.constant 0 : i32
    %c0_i32_0 = arith.constant 0 : i32
    %c0_i32_1 = arith.constant 0 : i32
    return %c0_i32, %c0_i32_0 : i32, i32
  }
  func.func @transform_15(%arg0: i32) -> (i32, i32) {
    %c0_i32 = arith.constant 0 : i32
    %c0_i32_0 = arith.constant 0 : i32
    return %arg0, %c0_i32 : i32, i32
  }
  func.func @transform_16(%arg0: i32) -> (i32, i32) {
    %c0_i32 = arith.constant 0 : i32
    %c0_i32_0 = arith.constant 0 : i32
    return %arg0, %c0_i32 : i32, i32
  }
}

</mosaic_0001>

<llo_original>
// kernel: mul.19
$region0: #{mul.19}
  #allocation0 [shape = 's32[1]{0}', space=sflag, size = 0x4, scoped, tag = 'scoped memory for mul.19']
  %s0 = inlined_call_operand.vmem [shape: f32[33,8], index: 0, kind: input, shape index: {}, may-alias: {0,1}]
  %s1 = inlined_call_operand.vmem [shape: f32[33,8], index: 1, kind: input, shape index: {}, may-alias: {0,1}]
  %s2 = inlined_call_operand.vmem [shape: f32[33,8], index: 2, kind: output, shape index: {}]
  %v3 = vld [vmem:[%s0] sm:$0xff]
  %v4 = vld [vmem:[%s1] sm:$0xff]
  %5 = xla_tuple %v3, %v4
  %6 = xla_tuple %5
  %v7 = vmul.f32 %v3, %v4
  %8 = xla_tuple %v7
  %9 = vst [vmem:[%s2] sm:$0xff] %v7

// kernel: bnn_forward.1
$region0: #{bnn_forward.1}
  #allocation0 [shape = 'u32[]', space=smem, size = 0x4, offset = 0x4, fixed_abs, tag = 'smem constant byte address 0x4 - core index']
  #allocation1 [shape = 'u32[72,128]{1,0:T(1,128)}', space=vmem, size = 0x9000, scoped, tag = 'internal scratch']
  %s0 = inlined_call_operand.vmem [shape: f32[32,32], index: 0, kind: input, shape index: {}]
  %s1 = inlined_call_operand.vmem [shape: f32[32,32], index: 1, kind: input, shape index: {}]
  %s2 = inlined_call_operand.vmem [shape: f32[32,32], index: 2, kind: input, shape index: {}]
  %s3 = inlined_call_operand.vmem [shape: f32[32,32], index: 3, kind: input, shape index: {}]
  %s4 = inlined_call_operand.vmem [shape: f32[32,32], index: 4, kind: input, shape index: {}]
  %s5 = inlined_call_operand.vmem [shape: f32[1,32], index: 5, kind: input, shape index: {}]
  %s6 = inlined_call_operand.vmem [shape: f32[1,32], index: 6, kind: input, shape index: {}]
  %s7 = inlined_call_operand.vmem [shape: f32[32,32], index: 7, kind: input, shape index: {}]
  %s8 = inlined_call_operand.vmem [shape: f32[32,32], index: 8, kind: input, shape index: {}]
  %s9 = inlined_call_operand.vmem [shape: f32[1,32], index: 9, kind: input, shape index: {}]
  %s10 = inlined_call_operand.vmem [shape: f32[1,32], index: 10, kind: input, shape index: {}]
  %s11 = inlined_call_operand.vmem [shape: f32[32,8], index: 11, kind: input, shape index: {}]
  %s12 = inlined_call_operand.vmem [shape: f32[32,8], index: 12, kind: input, shape index: {}]
  %s13 = inlined_call_operand.vmem [shape: f32[1,8], index: 13, kind: input, shape index: {}]
  %s14 = inlined_call_operand.vmem [shape: f32[1,8], index: 14, kind: input, shape index: {}]
  %s15 = inlined_call_operand.vmem [shape: f32[32,104], index: 15, kind: input, shape index: {}]
  %s16 = inlined_call_operand.hbm [shape: f32[32,8], index: 16, kind: output, shape index: {}]
  %s17 = sld [smem:[#allocation0]]
  $region74: #{bnn_forward.1} parent=0
    _
  %s19 = ssub.s32 1, %s17
  %s20 = scalar_select 0, %s19, %s17
  $region1: #{bnn_forward.1} parent=0
    #allocation2 [shape = 'u8[16384]{0}', space=vmem, size = 0x4000, scoped, tag = 'output window, operand 0, single buffered']
    #allocation3 [shape = 's32[1]{0}', space=sflag, size = 0x4, scoped, tag = 'scoped memory for bnn_forward.1']
    %21 = vsyncpa [#allocation3], 0
    // Predicated region
    $region2: #{bnn_forward.1} parent=1 // pred_check
      _
    $region3: #{bnn_forward.1} parent=1 // pred_check_branch
      %23 = sbr.rel (0) target = $region5
    $region4: #{bnn_forward.1} parent=1 // pred_region
      _
    $region5: #{bnn_forward.1} parent=1 // pred_fallthru
      _
    // Predicated region
    $region6: #{bnn_forward.1} parent=1 // pred_check
      _
    $region7: #{bnn_forward.1} parent=1 // pred_check_branch
      %25 = sbr.rel (0) target = $region9
    $region8: #{bnn_forward.1} parent=1 // pred_region
      _
    $region9: #{bnn_forward.1} parent=1 // pred_fallthru
      _
    // Predicated region
    $region10: #{bnn_forward.1} parent=1 // pred_check
      _
    $region11: #{bnn_forward.1} parent=1 // pred_check_branch
      %27 = sbr.rel (0) target = $region13
    $region12: #{bnn_forward.1} parent=1 // pred_region
      _
    $region13: #{bnn_forward.1} parent=1 // pred_fallthru
      _
    // Predicated region
    $region14: #{bnn_forward.1} parent=1 // pred_check
      _
    $region15: #{bnn_forward.1} parent=1 // pred_check_branch
      %29 = sbr.rel (0) target = $region17
    $region16: #{bnn_forward.1} parent=1 // pred_region
      _
    $region17: #{bnn_forward.1} parent=1 // pred_fallthru
      _
    // Predicated region
    $region18: #{bnn_forward.1} parent=1 // pred_check
      _
    $region19: #{bnn_forward.1} parent=1 // pred_check_branch
      %31 = sbr.rel (0) target = $region21
    $region20: #{bnn_forward.1} parent=1 // pred_region
      _
    $region21: #{bnn_forward.1} parent=1 // pred_fallthru
      _
    // Predicated region
    $region22: #{bnn_forward.1} parent=1 // pred_check
      _
    $region23: #{bnn_forward.1} parent=1 // pred_check_branch
      %33 = sbr.rel (0) target = $region25
    $region24: #{bnn_forward.1} parent=1 // pred_region
      _
    $region25: #{bnn_forward.1} parent=1 // pred_fallthru
      _
    // Predicated region
    $region26: #{bnn_forward.1} parent=1 // pred_check
      _
    $region27: #{bnn_forward.1} parent=1 // pred_check_branch
      %35 = sbr.rel (0) target = $region29
    $region28: #{bnn_forward.1} parent=1 // pred_region
      _
    $region29: #{bnn_forward.1} parent=1 // pred_fallthru
      _
    // Predicated region
    $region30: #{bnn_forward.1} parent=1 // pred_check
      _
    $region31: #{bnn_forward.1} parent=1 // pred_check_branch
      %37 = sbr.rel (0) target = $region33
    $region32: #{bnn_forward.1} parent=1 // pred_region
      _
    $region33: #{bnn_forward.1} parent=1 // pred_fallthru
      _
    // Predicated region
    $region34: #{bnn_forward.1} parent=1 // pred_check
      _
    $region35: #{bnn_forward.1} parent=1 // pred_check_branch
      %39 = sbr.rel (0) target = $region37
    $region36: #{bnn_forward.1} parent=1 // pred_region
      _
    $region37: #{bnn_forward.1} parent=1 // pred_fallthru
      _
    // Predicated region
    $region38: #{bnn_forward.1} parent=1 // pred_check
      _
    $region39: #{bnn_forward.1} parent=1 // pred_check_branch
      %41 = sbr.rel (0) target = $region41
    $region40: #{bnn_forward.1} parent=1 // pred_region
      _
    $region41: #{bnn_forward.1} parent=1 // pred_fallthru
      _
    // Predicated region
    $region42: #{bnn_forward.1} parent=1 // pred_check
      _
    $region43: #{bnn_forward.1} parent=1 // pred_check_branch
      %43 = sbr.rel (0) target = $region45
    $region44: #{bnn_forward.1} parent=1 // pred_region
      _
    $region45: #{bnn_forward.1} parent=1 // pred_fallthru
      _
    // Predicated region
    $region46: #{bnn_forward.1} parent=1 // pred_check
      _
    $region47: #{bnn_forward.1} parent=1 // pred_check_branch
      %45 = sbr.rel (0) target = $region49
    $region48: #{bnn_forward.1} parent=1 // pred_region
      _
    $region49: #{bnn_forward.1} parent=1 // pred_fallthru
      _
    // Predicated region
    $region50: #{bnn_forward.1} parent=1 // pred_check
      _
    $region51: #{bnn_forward.1} parent=1 // pred_check_branch
      %47 = sbr.rel (0) target = $region53
    $region52: #{bnn_forward.1} parent=1 // pred_region
      _
    $region53: #{bnn_forward.1} parent=1 // pred_fallthru
      _
    // Predicated region
    $region54: #{bnn_forward.1} parent=1 // pred_check
      _
    $region55: #{bnn_forward.1} parent=1 // pred_check_branch
      %49 = sbr.rel (0) target = $region57
    $region56: #{bnn_forward.1} parent=1 // pred_region
      _
    $region57: #{bnn_forward.1} parent=1 // pred_fallthru
      _
    // Predicated region
    $region58: #{bnn_forward.1} parent=1 // pred_check
      _
    $region59: #{bnn_forward.1} parent=1 // pred_check_branch
      %51 = sbr.rel (0) target = $region61
    $region60: #{bnn_forward.1} parent=1 // pred_region
      _
    $region61: #{bnn_forward.1} parent=1 // pred_fallthru
      _
    // Predicated region
    $region62: #{bnn_forward.1} parent=1 // pred_check
      _
    $region63: #{bnn_forward.1} parent=1 // pred_check_branch
      %53 = sbr.rel (0) target = $region65
    $region64: #{bnn_forward.1} parent=1 // pred_region
      _
    $region65: #{bnn_forward.1} parent=1 // pred_fallthru
      _
    %v54 = vld [vmem:[%s0] sm:$0xff]
    %v55 = vld [vmem:[%s0 + $0x8] sm:$0xff]
    %v56 = vld [vmem:[%s0 + $0x10] sm:$0xff]
    %v57 = vld [vmem:[%s0 + $0x18] sm:$0xff]
    %v58 = vld [vmem:[%s15] sm:$0xff]
    %v59 = vld [vmem:[%s15 + $0x8] sm:$0xff]
    %v60 = vld [vmem:[%s15 + $0x10] sm:$0xff]
    %v61 = vld [vmem:[%s15 + $0x18] sm:$0xff]
    %v62 = vld [vmem:[%s1] sm:$0xff]
    %v63 = vld [vmem:[%s1 + $0x8] sm:$0xff]
    %v64 = vld [vmem:[%s1 + $0x10] sm:$0xff]
    %v65 = vld [vmem:[%s1 + $0x18] sm:$0xff]
    %v66 = vmul.f32 %v54, %v54
    %v67 = vmul.f32 %v55, %v55
    %v68 = vmul.f32 %v56, %v56
    %v69 = vmul.f32 %v57, %v57
    %v70 = vld [vmem:[%s2] sm:$0xff]
    %v71 = vld [vmem:[%s2 + $0x8] sm:$0xff]
    %v72 = vld [vmem:[%s2 + $0x10] sm:$0xff]
    %v73 = vld [vmem:[%s2 + $0x18] sm:$0xff]
    %vm74 = vcmask 261120
    %v76 = vsel %vm74, %v66, 0
    %v79 = vsel %vm74, %v67, 0
    %v82 = vsel %vm74, %v68, 0
    %v85 = vsel %vm74, %v69, 0
    %87 = vmatpush.msra.mxu0 0.0
    %88 = vmatpush.msra.mxu0 0.0
    %89 = vmatpush.msra.mxu0 0.0
    %90 = vmatpush.msra.mxu0 0.0
    %91 = vmatpush.msra.mxu0 0.0
    %92 = vmatpush.msra.mxu0 0.0
    %93 = vmatpush.msra.mxu0 0.0
    %94 = vmatpush.msra.mxu0 0.0
    %95 = vmatpush.msra.mxu0 0.0
    %96 = vmatpush.msra.mxu0 0.0
    %97 = vmatpush.msra.mxu0 0.0
    %98 = vmatpush.msra.mxu0 0.0
    %99 = vmatpush.msra.mxu0 %v73
    %100 = vmatpush.msra.mxu0 %v72
    %101 = vmatpush.msra.mxu0 %v71
    %102 = vmatpush.msra.mxu0 %v70
    %103 = vmatmul.f32.gmra.mxu0 %v76
    %v104 = vpop.f32.mrf.mxu0
    %v105 = vadd.f32 0.0, %v104
    %106 = vmatmul.f32.gmra.mxu0 %v79
    %v107 = vpop.f32.mrf.mxu0
    %v108 = vadd.f32 0.0, %v107
    %109 = vmatmul.f32.gmra.mxu0 %v82
    %v110 = vpop.f32.mrf.mxu0
    %v111 = vadd.f32 0.0, %v110
    %112 = vmatmul.f32.gmra.mxu0 %v85
    %v113 = vpop.f32.mrf.mxu0
    %v114 = vadd.f32 0.0, %v113
    %115 = vdwg.mxu0
    %v116 = vrsqrt.pop %v105
    %v117 = vmul.f32 %v116, %v105
    %v118 = vmul.f32 %v117, %v116
    %v119 = vmul.f32 0.5, %v118
    %v120 = vsub.f32 1.5, %v119
    %v121 = vmul.f32 %v116, %v120
    %v122 = vmul.f32 %v105, %v121
    %vm123 = vcmp.eq.f32.partialorder %v105, inf
    %v124 = vsel %vm123, %v105, %v122
    %vm125 = vcmp.eq.f32.partialorder %v105, 0.0
    %v126 = vand.u32 %v105, 2147483648
    %v127 = vsel %vm125, %v126, %v124
    %v128 = vrsqrt.pop %v108
    %v129 = vmul.f32 %v128, %v108
    %v130 = vmul.f32 %v129, %v128
    %v131 = vmul.f32 0.5, %v130
    %v132 = vsub.f32 1.5, %v131
    %v133 = vmul.f32 %v128, %v132
    %v134 = vmul.f32 %v108, %v133
    %vm135 = vcmp.eq.f32.partialorder %v108, inf
    %v136 = vsel %vm135, %v108, %v134
    %vm137 = vcmp.eq.f32.partialorder %v108, 0.0
    %v138 = vand.u32 %v108, 2147483648
    %v139 = vsel %vm137, %v138, %v136
    %v140 = vrsqrt.pop %v111
    %v141 = vmul.f32 %v140, %v111
    %v142 = vmul.f32 %v141, %v140
    %v143 = vmul.f32 0.5, %v142
    %v144 = vsub.f32 1.5, %v143
    %v145 = vmul.f32 %v140, %v144
    %v146 = vmul.f32 %v111, %v145
    %vm147 = vcmp.eq.f32.partialorder %v111, inf
    %v148 = vsel %vm147, %v111, %v146
    %vm149 = vcmp.eq.f32.partialorder %v111, 0.0
    %v150 = vand.u32 %v111, 2147483648
    %v151 = vsel %vm149, %v150, %v148
    %v152 = vrsqrt.pop %v114
    %v153 = vmul.f32 %v152, %v114
    %v154 = vmul.f32 %v153, %v152
    %v155 = vmul.f32 0.5, %v154
    %v156 = vsub.f32 1.5, %v155
    %v157 = vmul.f32 %v152, %v156
    %v158 = vmul.f32 %v114, %v157
    %vm159 = vcmp.eq.f32.partialorder %v114, inf
    %v160 = vsel %vm159, %v114, %v158
    %vm161 = vcmp.eq.f32.partialorder %v114, 0.0
    %v162 = vand.u32 %v114, 2147483648
    %v163 = vsel %vm161, %v162, %v160
    %v164 = vmul.f32 %v127, %v58
    %v165 = vmul.f32 %v139, %v59
    %v166 = vmul.f32 %v151, %v60
    %v167 = vmul.f32 %v163, %v61
    %v169 = vsel %vm74, %v54, 0
    %v172 = vsel %vm74, %v55, 0
    %v175 = vsel %vm74, %v56, 0
    %v178 = vsel %vm74, %v57, 0
    %180 = vmatpush.msra.mxu0 0.0
    %181 = vmatpush.msra.mxu0 0.0
    %182 = vmatpush.msra.mxu0 0.0
    %183 = vmatpush.msra.mxu0 0.0
    %184 = vmatpush.msra.mxu0 0.0
    %185 = vmatpush.msra.mxu0 0.0
    %186 = vmatpush.msra.mxu0 0.0
    %187 = vmatpush.msra.mxu0 0.0
    %188 = vmatpush.msra.mxu0 0.0
    %189 = vmatpush.msra.mxu0 0.0
    %190 = vmatpush.msra.mxu0 0.0
    %191 = vmatpush.msra.mxu0 0.0
    %192 = vmatpush.msra.mxu0 %v65
    %193 = vmatpush.msra.mxu0 %v64
    %194 = vmatpush.msra.mxu0 %v63
    %195 = vmatpush.msra.mxu0 %v62
    %196 = vmatmul.f32.gmra.mxu0 %v169
    %v197 = vpop.f32.mrf.mxu0
    %v198 = vadd.f32 %v164, %v197
    %199 = vmatmul.f32.gmra.mxu0 %v172
    %v200 = vpop.f32.mrf.mxu0
    %v201 = vadd.f32 %v165, %v200
    %202 = vmatmul.f32.gmra.mxu0 %v175
    %v203 = vpop.f32.mrf.mxu0
    %v204 = vadd.f32 %v166, %v203
    %205 = vmatmul.f32.gmra.mxu0 %v178
    %v206 = vpop.f32.mrf.mxu0
    %v207 = vadd.f32 %v167, %v206
    %208 = vdwg.mxu0
    %vm209 = vcmp.ge.f32.partialorder %v198, 0.0
    %vm210 = vcmp.ge.f32.partialorder %v201, 0.0
    %vm211 = vcmp.ge.f32.partialorder %v204, 0.0
    %vm212 = vcmp.ge.f32.partialorder %v207, 0.0
    %v213 = vmul.f32 %v198, 0.01
    %v214 = vmul.f32 %v201, 0.01
    %v215 = vmul.f32 %v204, 0.01
    %v216 = vmul.f32 %v207, 0.01
    %v217 = vsel %vm209, %v198, %v213
    %v218 = vsel %vm210, %v201, %v214
    %v219 = vsel %vm211, %v204, %v215
    %v220 = vsel %vm212, %v207, %v216
    %v221 = vld [vmem:[%s3] sm:$0xff]
    %v222 = vld [vmem:[%s3 + $0x8] sm:$0xff]
    %v223 = vld [vmem:[%s3 + $0x10] sm:$0xff]
    %v224 = vld [vmem:[%s3 + $0x18] sm:$0xff]
    %v225 = vmul.f32 %v217, %v217
    %v226 = vmul.f32 %v218, %v218
    %v227 = vmul.f32 %v219, %v219
    %v228 = vmul.f32 %v220, %v220
    %v229 = vld [vmem:[%s4] sm:$0xff]
    %v230 = vld [vmem:[%s4 + $0x8] sm:$0xff]
    %v231 = vld [vmem:[%s4 + $0x10] sm:$0xff]
    %v232 = vld [vmem:[%s4 + $0x18] sm:$0xff]
    %v233 = vld [vmem:[%s5] sm:$0x1]
    %v235 = vperm.slane %v233, 0
    %v238 = vsel %vm74, %v217, 0
    %v241 = vsel %vm74, %v218, 0
    %v244 = vsel %vm74, %v219, 0
    %v247 = vsel %vm74, %v220, 0
    %249 = vmatpush.msra.mxu0 0.0
    %250 = vmatpush.msra.mxu0 0.0
    %251 = vmatpush.msra.mxu0 0.0
    %252 = vmatpush.msra.mxu0 0.0
    %253 = vmatpush.msra.mxu0 0.0
    %254 = vmatpush.msra.mxu0 0.0
    %255 = vmatpush.msra.mxu0 0.0
    %256 = vmatpush.msra.mxu0 0.0
    %257 = vmatpush.msra.mxu0 0.0
    %258 = vmatpush.msra.mxu0 0.0
    %259 = vmatpush.msra.mxu0 0.0
    %260 = vmatpush.msra.mxu0 0.0
    %261 = vmatpush.msra.mxu0 %v224
    %262 = vmatpush.msra.mxu0 %v223
    %263 = vmatpush.msra.mxu0 %v222
    %264 = vmatpush.msra.mxu0 %v221
    %265 = vmatmul.f32.gmra.mxu0 %v238
    %v266 = vpop.f32.mrf.mxu0
    %v267 = vadd.f32 %v235, %v266
    %268 = vmatmul.f32.gmra.mxu0 %v241
    %v269 = vpop.f32.mrf.mxu0
    %v270 = vadd.f32 %v235, %v269
    %271 = vmatmul.f32.gmra.mxu0 %v244
    %v272 = vpop.f32.mrf.mxu0
    %v273 = vadd.f32 %v235, %v272
    %274 = vmatmul.f32.gmra.mxu0 %v247
    %v275 = vpop.f32.mrf.mxu0
    %v276 = vadd.f32 %v235, %v275
    %277 = vdwg.mxu0
    %v278 = vld [vmem:[%s6] sm:$0x1]
    %v280 = vperm.slane %v278, 0
    %v283 = vsel %vm74, %v225, 0
    %v286 = vsel %vm74, %v226, 0
    %v289 = vsel %vm74, %v227, 0
    %v292 = vsel %vm74, %v228, 0
    %294 = vmatpush.msra.mxu0 0.0
    %295 = vmatpush.msra.mxu0 0.0
    %296 = vmatpush.msra.mxu0 0.0
    %297 = vmatpush.msra.mxu0 0.0
    %298 = vmatpush.msra.mxu0 0.0
    %299 = vmatpush.msra.mxu0 0.0
    %300 = vmatpush.msra.mxu0 0.0
    %301 = vmatpush.msra.mxu0 0.0
    %302 = vmatpush.msra.mxu0 0.0
    %303 = vmatpush.msra.mxu0 0.0
    %304 = vmatpush.msra.mxu0 0.0
    %305 = vmatpush.msra.mxu0 0.0
    %306 = vmatpush.msra.mxu0 %v232
    %307 = vmatpush.msra.mxu0 %v231
    %308 = vmatpush.msra.mxu0 %v230
    %309 = vmatpush.msra.mxu0 %v229
    %310 = vmatmul.f32.gmra.mxu0 %v283
    %v311 = vpop.f32.mrf.mxu0
    %v312 = vadd.f32 %v280, %v311
    %313 = vmatmul.f32.gmra.mxu0 %v286
    %v314 = vpop.f32.mrf.mxu0
    %v315 = vadd.f32 %v280, %v314
    %316 = vmatmul.f32.gmra.mxu0 %v289
    %v317 = vpop.f32.mrf.mxu0
    %v318 = vadd.f32 %v280, %v317
    %319 = vmatmul.f32.gmra.mxu0 %v292
    %v320 = vpop.f32.mrf.mxu0
    %v321 = vadd.f32 %v280, %v320
    %322 = vdwg.mxu0
    %v323 = vrsqrt.pop %v312
    %v324 = vmul.f32 %v323, %v312
    %v325 = vmul.f32 %v324, %v323
    %v326 = vmul.f32 0.5, %v325
    %v327 = vsub.f32 1.5, %v326
    %v328 = vmul.f32 %v323, %v327
    %v329 = vmul.f32 %v312, %v328
    %vm330 = vcmp.eq.f32.partialorder %v312, inf
    %v331 = vsel %vm330, %v312, %v329
    %vm332 = vcmp.eq.f32.partialorder %v312, 0.0
    %v333 = vand.u32 %v312, 2147483648
    %v334 = vsel %vm332, %v333, %v331
    %v335 = vrsqrt.pop %v315
    %v336 = vmul.f32 %v335, %v315
    %v337 = vmul.f32 %v336, %v335
    %v338 = vmul.f32 0.5, %v337
    %v339 = vsub.f32 1.5, %v338
    %v340 = vmul.f32 %v335, %v339
    %v341 = vmul.f32 %v315, %v340
    %vm342 = vcmp.eq.f32.partialorder %v315, inf
    %v343 = vsel %vm342, %v315, %v341
    %vm344 = vcmp.eq.f32.partialorder %v315, 0.0
    %v345 = vand.u32 %v315, 2147483648
    %v346 = vsel %vm344, %v345, %v343
    %v347 = vrsqrt.pop %v318
    %v348 = vmul.f32 %v347, %v318
    %v349 = vmul.f32 %v348, %v347
    %v350 = vmul.f32 0.5, %v349
    %v351 = vsub.f32 1.5, %v350
    %v352 = vmul.f32 %v347, %v351
    %v353 = vmul.f32 %v318, %v352
    %vm354 = vcmp.eq.f32.partialorder %v318, inf
    %v355 = vsel %vm354, %v318, %v353
    %vm356 = vcmp.eq.f32.partialorder %v318, 0.0
    %v357 = vand.u32 %v318, 2147483648
    %v358 = vsel %vm356, %v357, %v355
    %v359 = vrsqrt.pop %v321
    %v360 = vmul.f32 %v359, %v321
    %v361 = vmul.f32 %v360, %v359
    %v362 = vmul.f32 0.5, %v361
    %v363 = vsub.f32 1.5, %v362
    %v364 = vmul.f32 %v359, %v363
    %v365 = vmul.f32 %v321, %v364
    %vm366 = vcmp.eq.f32.partialorder %v321, inf
    %v367 = vsel %vm366, %v321, %v365
    %vm368 = vcmp.eq.f32.partialorder %v321, 0.0
    %v369 = vand.u32 %v321, 2147483648
    %v370 = vsel %vm368, %v369, %v367
    %375 = vrot.lane.b32.xlu0 %v58, 96
    %v376 = vpop.permute.xlu0 %375
    %377 = vrot.lane.b32.xlu0 %v59, 96
    %v378 = vpop.permute.xlu0 %377
    %379 = vrot.lane.b32.xlu0 %v60, 96
    %v380 = vpop.permute.xlu0 %379
    %381 = vrot.lane.b32.xlu0 %v61, 96
    %v382 = vpop.permute.xlu0 %381
    %v387 = vmul.f32 %v334, %v376
    %v388 = vmul.f32 %v346, %v378
    %v389 = vmul.f32 %v358, %v380
    %v390 = vmul.f32 %v370, %v382
    %v391 = vadd.f32 %v267, %v387
    %v392 = vadd.f32 %v270, %v388
    %v393 = vadd.f32 %v273, %v389
    %v394 = vadd.f32 %v276, %v390
    %vm395 = vcmp.ge.f32.partialorder %v391, 0.0
    %vm396 = vcmp.ge.f32.partialorder %v392, 0.0
    %vm397 = vcmp.ge.f32.partialorder %v393, 0.0
    %vm398 = vcmp.ge.f32.partialorder %v394, 0.0
    %v399 = vmul.f32 %v391, 0.01
    %v400 = vmul.f32 %v392, 0.01
    %v401 = vmul.f32 %v393, 0.01
    %v402 = vmul.f32 %v394, 0.01
    %v403 = vsel %vm395, %v391, %v399
    %v404 = vsel %vm396, %v392, %v400
    %v405 = vsel %vm397, %v393, %v401
    %v406 = vsel %vm398, %v394, %v402
    %v407 = vld [vmem:[%s7] sm:$0xff]
    %v408 = vld [vmem:[%s7 + $0x8] sm:$0xff]
    %v409 = vld [vmem:[%s7 + $0x10] sm:$0xff]
    %v410 = vld [vmem:[%s7 + $0x18] sm:$0xff]
    %v411 = vmul.f32 %v403, %v403
    %v412 = vmul.f32 %v404, %v404
    %v413 = vmul.f32 %v405, %v405
    %v414 = vmul.f32 %v406, %v406
    %v415 = vld [vmem:[%s8] sm:$0xff]
    %v416 = vld [vmem:[%s8 + $0x8] sm:$0xff]
    %v417 = vld [vmem:[%s8 + $0x10] sm:$0xff]
    %v418 = vld [vmem:[%s8 + $0x18] sm:$0xff]
    %v419 = vld [vmem:[%s9] sm:$0x1]
    %v421 = vperm.slane %v419, 0
    %v424 = vsel %vm74, %v403, 0
    %v427 = vsel %vm74, %v404, 0
    %v430 = vsel %vm74, %v405, 0
    %v433 = vsel %vm74, %v406, 0
    %435 = vmatpush.msra.mxu0 0.0
    %436 = vmatpush.msra.mxu0 0.0
    %437 = vmatpush.msra.mxu0 0.0
    %438 = vmatpush.msra.mxu0 0.0
    %439 = vmatpush.msra.mxu0 0.0
    %440 = vmatpush.msra.mxu0 0.0
    %441 = vmatpush.msra.mxu0 0.0
    %442 = vmatpush.msra.mxu0 0.0
    %443 = vmatpush.msra.mxu0 0.0
    %444 = vmatpush.msra.mxu0 0.0
    %445 = vmatpush.msra.mxu0 0.0
    %446 = vmatpush.msra.mxu0 0.0
    %447 = vmatpush.msra.mxu0 %v410
    %448 = vmatpush.msra.mxu0 %v409
    %449 = vmatpush.msra.mxu0 %v408
    %450 = vmatpush.msra.mxu0 %v407
    %451 = vmatmul.f32.gmra.mxu0 %v424
    %v452 = vpop.f32.mrf.mxu0
    %v453 = vadd.f32 %v421, %v452
    %454 = vmatmul.f32.gmra.mxu0 %v427
    %v455 = vpop.f32.mrf.mxu0
    %v456 = vadd.f32 %v421, %v455
    %457 = vmatmul.f32.gmra.mxu0 %v430
    %v458 = vpop.f32.mrf.mxu0
    %v459 = vadd.f32 %v421, %v458
    %460 = vmatmul.f32.gmra.mxu0 %v433
    %v461 = vpop.f32.mrf.mxu0
    %v462 = vadd.f32 %v421, %v461
    %463 = vdwg.mxu0
    %v464 = vld [vmem:[%s10] sm:$0x1]
    %v466 = vperm.slane %v464, 0
    %v469 = vsel %vm74, %v411, 0
    %v472 = vsel %vm74, %v412, 0
    %v475 = vsel %vm74, %v413, 0
    %v478 = vsel %vm74, %v414, 0
    %480 = vmatpush.msra.mxu0 0.0
    %481 = vmatpush.msra.mxu0 0.0
    %482 = vmatpush.msra.mxu0 0.0
    %483 = vmatpush.msra.mxu0 0.0
    %484 = vmatpush.msra.mxu0 0.0
    %485 = vmatpush.msra.mxu0 0.0
    %486 = vmatpush.msra.mxu0 0.0
    %487 = vmatpush.msra.mxu0 0.0
    %488 = vmatpush.msra.mxu0 0.0
    %489 = vmatpush.msra.mxu0 0.0
    %490 = vmatpush.msra.mxu0 0.0
    %491 = vmatpush.msra.mxu0 0.0
    %492 = vmatpush.msra.mxu0 %v418
    %493 = vmatpush.msra.mxu0 %v417
    %494 = vmatpush.msra.mxu0 %v416
    %495 = vmatpush.msra.mxu0 %v415
    %496 = vmatmul.f32.gmra.mxu0 %v469
    %v497 = vpop.f32.mrf.mxu0
    %v498 = vadd.f32 %v466, %v497
    %499 = vmatmul.f32.gmra.mxu0 %v472
    %v500 = vpop.f32.mrf.mxu0
    %v501 = vadd.f32 %v466, %v500
    %502 = vmatmul.f32.gmra.mxu0 %v475
    %v503 = vpop.f32.mrf.mxu0
    %v504 = vadd.f32 %v466, %v503
    %505 = vmatmul.f32.gmra.mxu0 %v478
    %v506 = vpop.f32.mrf.mxu0
    %v507 = vadd.f32 %v466, %v506
    %508 = vdwg.mxu0
    %v509 = vrsqrt.pop %v498
    %v510 = vmul.f32 %v509, %v498
    %v511 = vmul.f32 %v510, %v509
    %v512 = vmul.f32 0.5, %v511
    %v513 = vsub.f32 1.5, %v512
    %v514 = vmul.f32 %v509, %v513
    %v515 = vmul.f32 %v498, %v514
    %vm516 = vcmp.eq.f32.partialorder %v498, inf
    %v517 = vsel %vm516, %v498, %v515
    %vm518 = vcmp.eq.f32.partialorder %v498, 0.0
    %v519 = vand.u32 %v498, 2147483648
    %v520 = vsel %vm518, %v519, %v517
    %v521 = vrsqrt.pop %v501
    %v522 = vmul.f32 %v521, %v501
    %v523 = vmul.f32 %v522, %v521
    %v524 = vmul.f32 0.5, %v523
    %v525 = vsub.f32 1.5, %v524
    %v526 = vmul.f32 %v521, %v525
    %v527 = vmul.f32 %v501, %v526
    %vm528 = vcmp.eq.f32.partialorder %v501, inf
    %v529 = vsel %vm528, %v501, %v527
    %vm530 = vcmp.eq.f32.partialorder %v501, 0.0
    %v531 = vand.u32 %v501, 2147483648
    %v532 = vsel %vm530, %v531, %v529
    %v533 = vrsqrt.pop %v504
    %v534 = vmul.f32 %v533, %v504
    %v535 = vmul.f32 %v534, %v533
    %v536 = vmul.f32 0.5, %v535
    %v537 = vsub.f32 1.5, %v536
    %v538 = vmul.f32 %v533, %v537
    %v539 = vmul.f32 %v504, %v538
    %vm540 = vcmp.eq.f32.partialorder %v504, inf
    %v541 = vsel %vm540, %v504, %v539
    %vm542 = vcmp.eq.f32.partialorder %v504, 0.0
    %v543 = vand.u32 %v504, 2147483648
    %v544 = vsel %vm542, %v543, %v541
    %v545 = vrsqrt.pop %v507
    %v546 = vmul.f32 %v545, %v507
    %v547 = vmul.f32 %v546, %v545
    %v548 = vmul.f32 0.5, %v547
    %v549 = vsub.f32 1.5, %v548
    %v550 = vmul.f32 %v545, %v549
    %v551 = vmul.f32 %v507, %v550
    %vm552 = vcmp.eq.f32.partialorder %v507, inf
    %v553 = vsel %vm552, %v507, %v551
    %vm554 = vcmp.eq.f32.partialorder %v507, 0.0
    %v555 = vand.u32 %v507, 2147483648
    %v556 = vsel %vm554, %v555, %v553
    %557 = vrot.lane.b32.xlu0 %v58, 64
    %v558 = vpop.permute.xlu0 %557
    %559 = vrot.lane.b32.xlu0 %v59, 64
    %v560 = vpop.permute.xlu0 %559
    %561 = vrot.lane.b32.xlu0 %v60, 64
    %v562 = vpop.permute.xlu0 %561
    %563 = vrot.lane.b32.xlu0 %v61, 64
    %v564 = vpop.permute.xlu0 %563
    %v569 = vmul.f32 %v520, %v558
    %v570 = vmul.f32 %v532, %v560
    %v571 = vmul.f32 %v544, %v562
    %v572 = vmul.f32 %v556, %v564
    %v573 = vadd.f32 %v453, %v569
    %v574 = vadd.f32 %v456, %v570
    %v575 = vadd.f32 %v459, %v571
    %v576 = vadd.f32 %v462, %v572
    %vm577 = vcmp.ge.f32.partialorder %v573, 0.0
    %vm578 = vcmp.ge.f32.partialorder %v574, 0.0
    %vm579 = vcmp.ge.f32.partialorder %v575, 0.0
    %vm580 = vcmp.ge.f32.partialorder %v576, 0.0
    %v581 = vmul.f32 %v573, 0.01
    %v582 = vmul.f32 %v574, 0.01
    %v583 = vmul.f32 %v575, 0.01
    %v584 = vmul.f32 %v576, 0.01
    %v585 = vsel %vm577, %v573, %v581
    %v586 = vsel %vm578, %v574, %v582
    %v587 = vsel %vm579, %v575, %v583
    %v588 = vsel %vm580, %v576, %v584
    %v589 = vld [vmem:[%s11] sm:$0xff]
    %v590 = vld [vmem:[%s11 + $0x8] sm:$0xff]
    %v591 = vld [vmem:[%s11 + $0x10] sm:$0xff]
    %v592 = vld [vmem:[%s11 + $0x18] sm:$0xff]
    %v593 = vmul.f32 %v585, %v585
    %v594 = vmul.f32 %v586, %v586
    %v595 = vmul.f32 %v587, %v587
    %v596 = vmul.f32 %v588, %v588
    %v597 = vld [vmem:[%s12] sm:$0xff]
    %v598 = vld [vmem:[%s12 + $0x8] sm:$0xff]
    %v599 = vld [vmem:[%s12 + $0x10] sm:$0xff]
    %v600 = vld [vmem:[%s12 + $0x18] sm:$0xff]
    %v601 = vld [vmem:[%s13] sm:$0x1]
    %v603 = vperm.slane %v601, 0
    %v606 = vsel %vm74, %v585, 0
    %v609 = vsel %vm74, %v586, 0
    %v612 = vsel %vm74, %v587, 0
    %v615 = vsel %vm74, %v588, 0
    %617 = vmatpush.msra.mxu0 0.0
    %618 = vmatpush.msra.mxu0 0.0
    %619 = vmatpush.msra.mxu0 0.0
    %620 = vmatpush.msra.mxu0 0.0
    %621 = vmatpush.msra.mxu0 0.0
    %622 = vmatpush.msra.mxu0 0.0
    %623 = vmatpush.msra.mxu0 0.0
    %624 = vmatpush.msra.mxu0 0.0
    %625 = vmatpush.msra.mxu0 0.0
    %626 = vmatpush.msra.mxu0 0.0
    %627 = vmatpush.msra.mxu0 0.0
    %628 = vmatpush.msra.mxu0 0.0
    %629 = vmatpush.msra.mxu0 %v592
    %630 = vmatpush.msra.mxu0 %v591
    %631 = vmatpush.msra.mxu0 %v590
    %632 = vmatpush.msra.mxu0 %v589
    %633 = vmatmul.f32.gmra.mxu0 %v606
    %v634 = vpop.f32.mrf.mxu0
    %v635 = vadd.f32 %v603, %v634
    %636 = vmatmul.f32.gmra.mxu0 %v609
    %v637 = vpop.f32.mrf.mxu0
    %v638 = vadd.f32 %v603, %v637
    %639 = vmatmul.f32.gmra.mxu0 %v612
    %v640 = vpop.f32.mrf.mxu0
    %v641 = vadd.f32 %v603, %v640
    %642 = vmatmul.f32.gmra.mxu0 %v615
    %v643 = vpop.f32.mrf.mxu0
    %v644 = vadd.f32 %v603, %v643
    %645 = vdwg.mxu0
    %v646 = vld [vmem:[%s14] sm:$0x1]
    %v648 = vperm.slane %v646, 0
    %v651 = vsel %vm74, %v593, 0
    %v654 = vsel %vm74, %v594, 0
    %v657 = vsel %vm74, %v595, 0
    %v660 = vsel %vm74, %v596, 0
    %662 = vmatpush.msra.mxu0 0.0
    %663 = vmatpush.msra.mxu0 0.0
    %664 = vmatpush.msra.mxu0 0.0
    %665 = vmatpush.msra.mxu0 0.0
    %666 = vmatpush.msra.mxu0 0.0
    %667 = vmatpush.msra.mxu0 0.0
    %668 = vmatpush.msra.mxu0 0.0
    %669 = vmatpush.msra.mxu0 0.0
    %670 = vmatpush.msra.mxu0 0.0
    %671 = vmatpush.msra.mxu0 0.0
    %672 = vmatpush.msra.mxu0 0.0
    %673 = vmatpush.msra.mxu0 0.0
    %674 = vmatpush.msra.mxu0 %v600
    %675 = vmatpush.msra.mxu0 %v599
    %676 = vmatpush.msra.mxu0 %v598
    %677 = vmatpush.msra.mxu0 %v597
    %678 = vmatmul.f32.gmra.mxu0 %v651
    %v679 = vpop.f32.mrf.mxu0
    %v680 = vadd.f32 %v648, %v679
    %681 = vmatmul.f32.gmra.mxu0 %v654
    %v682 = vpop.f32.mrf.mxu0
    %v683 = vadd.f32 %v648, %v682
    %684 = vmatmul.f32.gmra.mxu0 %v657
    %v685 = vpop.f32.mrf.mxu0
    %v686 = vadd.f32 %v648, %v685
    %687 = vmatmul.f32.gmra.mxu0 %v660
    %v688 = vpop.f32.mrf.mxu0
    %v689 = vadd.f32 %v648, %v688
    %690 = vdwg.mxu0
    %v691 = vrsqrt.pop %v680
    %v692 = vmul.f32 %v691, %v680
    %v693 = vmul.f32 %v692, %v691
    %v694 = vmul.f32 0.5, %v693
    %v695 = vsub.f32 1.5, %v694
    %v696 = vmul.f32 %v691, %v695
    %v697 = vmul.f32 %v680, %v696
    %vm698 = vcmp.eq.f32.partialorder %v680, inf
    %v699 = vsel %vm698, %v680, %v697
    %vm700 = vcmp.eq.f32.partialorder %v680, 0.0
    %v701 = vand.u32 %v680, 2147483648
    %v702 = vsel %vm700, %v701, %v699
    %v703 = vrsqrt.pop %v683
    %v704 = vmul.f32 %v703, %v683
    %v705 = vmul.f32 %v704, %v703
    %v706 = vmul.f32 0.5, %v705
    %v707 = vsub.f32 1.5, %v706
    %v708 = vmul.f32 %v703, %v707
    %v709 = vmul.f32 %v683, %v708
    %vm710 = vcmp.eq.f32.partialorder %v683, inf
    %v711 = vsel %vm710, %v683, %v709
    %vm712 = vcmp.eq.f32.partialorder %v683, 0.0
    %v713 = vand.u32 %v683, 2147483648
    %v714 = vsel %vm712, %v713, %v711
    %v715 = vrsqrt.pop %v686
    %v716 = vmul.f32 %v715, %v686
    %v717 = vmul.f32 %v716, %v715
    %v718 = vmul.f32 0.5, %v717
    %v719 = vsub.f32 1.5, %v718
    %v720 = vmul.f32 %v715, %v719
    %v721 = vmul.f32 %v686, %v720
    %vm722 = vcmp.eq.f32.partialorder %v686, inf
    %v723 = vsel %vm722, %v686, %v721
    %vm724 = vcmp.eq.f32.partialorder %v686, 0.0
    %v725 = vand.u32 %v686, 2147483648
    %v726 = vsel %vm724, %v725, %v723
    %v727 = vrsqrt.pop %v689
    %v728 = vmul.f32 %v727, %v689
    %v729 = vmul.f32 %v728, %v727
    %v730 = vmul.f32 0.5, %v729
    %v731 = vsub.f32 1.5, %v730
    %v732 = vmul.f32 %v727, %v731
    %v733 = vmul.f32 %v689, %v732
    %vm734 = vcmp.eq.f32.partialorder %v689, inf
    %v735 = vsel %vm734, %v689, %v733
    %vm736 = vcmp.eq.f32.partialorder %v689, 0.0
    %v737 = vand.u32 %v689, 2147483648
    %v738 = vsel %vm736, %v737, %v735
    %739 = vrot.lane.b32.xlu0 %v58, 32
    %v740 = vpop.permute.xlu0 %739
    %741 = vrot.lane.b32.xlu0 %v59, 32
    %v742 = vpop.permute.xlu0 %741
    %743 = vrot.lane.b32.xlu0 %v60, 32
    %v744 = vpop.permute.xlu0 %743
    %745 = vrot.lane.b32.xlu0 %v61, 32
    %v746 = vpop.permute.xlu0 %745
    %v751 = vmul.f32 %v702, %v740
    %v752 = vmul.f32 %v714, %v742
    %v753 = vmul.f32 %v726, %v744
    %v754 = vmul.f32 %v738, %v746
    %v755 = vadd.f32 %v635, %v751
    %v756 = vadd.f32 %v638, %v752
    %v757 = vadd.f32 %v641, %v753
    %v758 = vadd.f32 %v644, %v754
    %v759 = vxor.u32 %v755, 2147483648
    %v760 = vxor.u32 %v756, 2147483648
    %v761 = vxor.u32 %v757, 2147483648
    %v762 = vxor.u32 %v758, 2147483648
    %v763 = vmul.f32 %v759, 1.442695
    %v764 = vpow.pop %v763
    %v765 = vmul.f32 %v760, 1.442695
    %v766 = vpow.pop %v765
    %v767 = vmul.f32 %v761, 1.442695
    %v768 = vpow.pop %v767
    %v769 = vmul.f32 %v762, 1.442695
    %v770 = vpow.pop %v769
    %v771 = vadd.f32 %v764, 1.0
    %v772 = vadd.f32 %v766, 1.0
    %v773 = vadd.f32 %v768, 1.0
    %v774 = vadd.f32 %v770, 1.0
    %v775 = vrcp.pop %v771
    %v776 = vmul.f32 %v771, %v775
    %v777 = vsub.f32 1.0, %v776
    %v778 = vmul.f32 %v775, %v777
    %v779 = vadd.f32 %v775, %v778
    %vm780 = vweird.f32 %v771
    %vm781 = vweird.f32 %v775
    %vm782 = vmor %vm780, %vm781
    %v783 = vsel %vm782, %v775, %v779
    %v784 = vand.u32 2147483647, %v771
    %vm785 = vcmp.eq.f32.partialorder %v784, 8.507059e+37
    %v786 = vand.u32 %v771, 2147483648
    %v787 = vor.u32 1.1754944e-38, %v786
    %v788 = vsel %vm785, %v787, %v783
    %v789 = vmul.f32 1.0, %v788
    %v790 = vrcp.pop %v772
    %v791 = vmul.f32 %v772, %v790
    %v792 = vsub.f32 1.0, %v791
    %v793 = vmul.f32 %v790, %v792
    %v794 = vadd.f32 %v790, %v793
    %vm795 = vweird.f32 %v772
    %vm796 = vweird.f32 %v790
    %vm797 = vmor %vm795, %vm796
    %v798 = vsel %vm797, %v790, %v794
    %v799 = vand.u32 2147483647, %v772
    %vm800 = vcmp.eq.f32.partialorder %v799, 8.507059e+37
    %v801 = vand.u32 %v772, 2147483648
    %v802 = vor.u32 1.1754944e-38, %v801
    %v803 = vsel %vm800, %v802, %v798
    %v804 = vmul.f32 1.0, %v803
    %v805 = vrcp.pop %v773
    %v806 = vmul.f32 %v773, %v805
    %v807 = vsub.f32 1.0, %v806
    %v808 = vmul.f32 %v805, %v807
    %v809 = vadd.f32 %v805, %v808
    %vm810 = vweird.f32 %v773
    %vm811 = vweird.f32 %v805
    %vm812 = vmor %vm810, %vm811
    %v813 = vsel %vm812, %v805, %v809
    %v814 = vand.u32 2147483647, %v773
    %vm815 = vcmp.eq.f32.partialorder %v814, 8.507059e+37
    %v816 = vand.u32 %v773, 2147483648
    %v817 = vor.u32 1.1754944e-38, %v816
    %v818 = vsel %vm815, %v817, %v813
    %v819 = vmul.f32 1.0, %v818
    %v820 = vrcp.pop %v774
    %v821 = vmul.f32 %v774, %v820
    %v822 = vsub.f32 1.0, %v821
    %v823 = vmul.f32 %v820, %v822
    %v824 = vadd.f32 %v820, %v823
    %vm825 = vweird.f32 %v774
    %vm826 = vweird.f32 %v820
    %vm827 = vmor %vm825, %vm826
    %v828 = vsel %vm827, %v820, %v824
    %v829 = vand.u32 2147483647, %v774
    %vm830 = vcmp.eq.f32.partialorder %v829, 8.507059e+37
    %v831 = vand.u32 %v774, 2147483648
    %v832 = vor.u32 1.1754944e-38, %v831
    %v833 = vsel %vm830, %v832, %v828
    %v834 = vmul.f32 1.0, %v833
    %vm835 = vcmask 64512
    %836 = vst.msk [vmem:[#allocation2] sm:$0xff] %vm835, %v789
    %837 = vst.msk [vmem:[#allocation2 + $0x8] sm:$0xff] %vm835, %v804
    %838 = vst.msk [vmem:[#allocation2 + $0x10] sm:$0xff] %vm835, %v819
    %839 = vst.msk [vmem:[#allocation2 + $0x18] sm:$0xff] %vm835, %v834
    // Predicated region
    $region66: #{bnn_forward.1} parent=1 // pred_check
      _
    $region67: #{bnn_forward.1} parent=1 // pred_check_branch
      %841 = sbr.rel (0) target = $region69
    $region68: #{bnn_forward.1} parent=1 // pred_region
      %843 = vsyncadd [#allocation3], 0
      %s844 = sshll.u32 [#allocation2], 4
      %s845 = int_to_ptr.vmem [resolvable:$true] %s844
      %s846 = sshll.u32 %s16, 4
      %s847 = int_to_ptr.hbm [resolvable:$true] %s846
      %852 = dma.vmem_to_hbm [thread:$0]  %s845, 512, %s847, [#allocation3], 128, 128, 8
    $region69: #{bnn_forward.1} parent=1 // pred_fallthru
      _
    // Predicated region
    $region70: #{bnn_forward.1} parent=1 // pred_check
      _
    $region71: #{bnn_forward.1} parent=1 // pred_check_branch
      %854 = sbr.rel (0) target = $region73
    $region72: #{bnn_forward.1} parent=1 // pred_region
      %856 = dma.done [#allocation3], 512
    $region73: #{bnn_forward.1} parent=1 // pred_fallthru
      _
    %857 = vsyncpa [#allocation3], 1

</llo_original>
